<compile_context>
chip_gen: v7x
topology: tpu7x:2x2x1
jax: 0.10.0
libtpu: 0.0.40
codegen_flags: <defaults>
</compile_context>

<pallas_src>
import jax
import jax.numpy as jnp
from jax.experimental import pallas as pl
from jax.experimental.pallas import tpu as pltpu


def _round_up(x: int, m: int) -> int:
    return ((x + m - 1) // m) * m


def _scale_kernel(scale: float):
    """Elementwise multiply-by-constant on one VMEM tile (single VPU op)."""

    def kernel(z_ref, o_ref):
        o_ref[...] = (z_ref[...].astype(jnp.float32) *
                      jnp.float32(scale)).astype(o_ref.dtype)

    return kernel


def depth_normalizer_forward(z: jax.Array,
                             input_size: int = 512,
                             z_size: int = 200,
                             *,
                             block_rows: int = 512,
                             block_cols: int = 1024,
                             min_grid_steps: int = 4,
                             use_pallas: bool | None = None) -> jax.Array:
    """Pallas implementation of DepthNormalizer.forward.

    Args:
      z: [B, 1, N] depth values (floating dtype).
    Returns:
      [B, 1, N] normalized depth features, same dtype as z.
    """
    assert z.ndim == 3 and z.shape[1] == 1, "expected z of shape [B, 1, N]"
    assert jnp.issubdtype(z.dtype, jnp.floating), "z must be a floating dtype"
    assert block_rows % 8 == 0 and block_cols % 128 == 0
    B, C, N = z.shape
    # Integer floor-div matches PyTorch `input_size // 2`.
    scale = float(input_size // 2) / float(z_size)

    total = B * C * N
    itemsize = jnp.dtype(z.dtype).itemsize
    nbytes = total * itemsize
    if use_pallas is None:
        # Below ~2 MiB the pallas_call launch / pipeline-prime overhead dwarfs
        # the memory traffic; let XLA fuse the scalar multiply instead.
        use_pallas = nbytes >= (2 * 1024 * 1024)
    if not use_pallas:
        return (z.astype(jnp.float32) * jnp.float32(scale)).astype(z.dtype)

    # Sublane packing per dtype: f32 -> 8, bf16/f16 -> 16, 1-byte -> 32.
    sublane = {4: 8, 2: 16, 1: 32}.get(itemsize, 8)

    # ---- Path A: copy-free lane-dense slab (rows, cols), cols | total ----------
    cols = 0
    if total % 128 == 0:
        for cand in range(block_cols, 127, -128):
            if total % cand == 0:
                cols = cand
                break

    if cols:
        rows = total // cols
        slab = z.reshape(rows, cols)                       # view, no HBM traffic
        if rows <= sublane:
            tile_rows = rows                               # block dim == full dim
        else:
            # Aim for >= min_grid_steps pipelined steps; cap at block_rows.
            tile_rows = min(block_rows,
                            _round_up(pl.cdiv(rows, min_grid_steps), sublane))
        grid = (pl.cdiv(rows, tile_rows),)
        spec = pl.BlockSpec((tile_rows, cols), lambda i: (i, 0))
        out_shape2d = (rows, cols)
    else:
        # ---- Path B: (B*C, N) view, tile along N; partial last block is masked.
        rows = B * C
        slab = z.reshape(rows, N)                          # view, no HBM traffic
        tile_cols = min(block_cols, _round_up(N, 128))
        grid = (pl.cdiv(N, tile_cols),)
        spec = pl.BlockSpec((rows, tile_cols), lambda j: (0, j))
        out_shape2d = (rows, N)

    out2d = pl.pallas_call(
        _scale_kernel(scale),
        out_shape=jax.ShapeDtypeStruct(out_shape2d, z.dtype),
        grid_spec=pltpu.PrefetchScalarGridSpec(
            num_scalar_prefetch=0,
            grid=grid,
            in_specs=[spec],
            out_specs=spec,
        ),
        compiler_params=pltpu.CompilerParams(
            dimension_semantics=("parallel",),
        ),
        cost_estimate=pl.CostEstimate(
            flops=total, transcendentals=0, bytes_accessed=2 * nbytes),
    )(slab)

    return out2d.reshape(B, C, N)


if __name__ == "__main__":
    key = jax.random.PRNGKey(0)
    input_size, z_size = 512, 200
    scale = (input_size // 2) / z_size

    # Case 1: small, total % 128 == 0 -> lane-dense slab path, grid = 1.
    z1 = jax.random.uniform(key, (2, 1, 256), dtype=jnp.float32,
                            minval=-1.0, maxval=1.0)
    # Case 2: N not a multiple of 128 -> (B*C, N) view tiled along N,
    #          masked partial last block, grid = 4.
    z2 = jax.random.uniform(jax.random.PRNGKey(1), (2, 1, 4000),
                            dtype=jnp.float32, minval=-1.0, maxval=1.0)
    # Case 3: slab path with grid >= 2 pipelined steps.
    z3 = jax.random.uniform(jax.random.PRNGKey(2), (2, 1, 8192),
                            dtype=jnp.float32, minval=-1.0, maxval=1.0)

    for z in (z1, z2, z3):
        out = jax.block_until_ready(
            depth_normalizer_forward(z, input_size=input_size, z_size=z_size,
                                     use_pallas=True))
        ref = z * (input_size // 2) / z_size
        assert out.shape == z.shape and out.dtype == z.dtype
        assert jnp.allclose(out, ref, rtol=1e-6, atol=1e-6)

    # Case 4: bf16 input exercises the 16-sublane packing path.
    z4 = z3.astype(jnp.bfloat16)
    out4 = jax.block_until_ready(
        depth_normalizer_forward(z4, input_size=input_size, z_size=z_size,
                                 use_pallas=True))
    ref4 = (z4.astype(jnp.float32) * jnp.float32(scale)).astype(jnp.bfloat16)
    assert out4.shape == z4.shape and out4.dtype == z4.dtype
    assert jnp.allclose(out4.astype(jnp.float32), ref4.astype(jnp.float32),
                        rtol=0, atol=2e-2)

    print("KERNEL_OK")
</pallas_src>

<mosaic_0001>
module attributes {stable_mosaic.version = 11 : i64} {
  func.func @kernel(%arg0: i32, %arg1: memref<1x512xf32, #tpu.memory_space<vmem>>, %arg2: memref<1x512xf32, #tpu.memory_space<vmem>>) attributes {dimension_semantics = [#tpu.dimension_semantics<parallel>], iteration_bounds = array<i64: 1>, scalar_prefetch = 0 : i64, scratch_operands = 0 : i64, tpu.core_type = #tpu.core_type<tc>, window_params = [{transform_indices = @transform_0, window_bounds = array<i64: 1, 512>}, {transform_indices = @transform_1, window_bounds = array<i64: 1, 512>}]} {
    %c0 = arith.constant 0 : index
    %c0_0 = arith.constant 0 : index
    %0 = vector.load %arg1[%c0, %c0_0] : memref<1x512xf32, #tpu.memory_space<vmem>>, vector<1x512xf32>
    %cst = arith.constant 1.280000e+00 : f32
    %1 = vector.broadcast %cst : f32 to vector<1x512xf32>
    %2 = arith.mulf %0, %1 : vector<1x512xf32>
    %c0_1 = arith.constant 0 : index
    %c0_2 = arith.constant 0 : index
    %3 = vector.load %arg2[%c0_1, %c0_2] : memref<1x512xf32, #tpu.memory_space<vmem>>, vector<1x512xf32>
    tpu.vector_store %arg2[%c0_1, %c0_2], %2 {strides = array<i32>} : memref<1x512xf32, #tpu.memory_space<vmem>>, vector<1x512xf32>,
    return
  }
  func.func @transform_0(%arg0: i32) -> (i32, i32) {
    %c0_i32 = arith.constant 0 : i32
    %c0_i32_0 = arith.constant 0 : i32
    return %arg0, %c0_i32 : i32, i32
  }
  func.func @transform_1(%arg0: i32) -> (i32, i32) {
    %c0_i32 = arith.constant 0 : i32
    %c0_i32_0 = arith.constant 0 : i32
    return %arg0, %c0_i32 : i32, i32
  }
}

</mosaic_0001>

<llo_original>
// kernel: tpu_custom_call.1
$region0: #{tpu_custom_call.1}
  #allocation0 [shape = 'u32[]', space=smem, size = 0x4, offset = 0x4, fixed_abs, tag = 'smem constant byte address 0x4 - core index']
  #allocation1 [shape = 'u32[144,128]{1,0:T(1,128)}', space=vmem, size = 0x12000, scoped, tag = 'internal scratch']
  %s0 = inlined_call_operand.hbm [shape: f32[1,512], index: 0, kind: input, shape index: {}]
  %s1 = inlined_call_operand.hbm [shape: f32[1,512], index: 1, kind: output, shape index: {}]
  %s2 = sld [smem:[#allocation0]]
  $region18: #{tpu_custom_call.1} parent=0
    _
  %s4 = ssub.s32 1, %s2
  %s5 = scalar_select 0, %s4, %s2
  $region1: #{tpu_custom_call.1} parent=0
    #allocation2 [shape = 'u8[2048]{0}', space=vmem, size = 0x800, scoped, tag = 'input window, operand 0, single buffered']
    #allocation3 [shape = 's32[1]{0}', space=sflag, size = 0x4, scoped, tag = 'scoped memory for tpu_custom_call.1']
    #allocation4 [shape = 's32[1]{0}', space=sflag, size = 0x4, scoped, tag = 'scoped memory for tpu_custom_call.1']
    #allocation5 [shape = 'u8[2048]{0}', space=vmem, size = 0x800, scoped, tag = 'output window, operand 0, single buffered']
    %6 = vsyncpa [#allocation3], 0
    %7 = vsyncpa [#allocation4], 0
    // Predicated region
    $region2: #{tpu_custom_call.1} parent=1 // pred_check
      _
    $region3: #{tpu_custom_call.1} parent=1 // pred_check_branch
      %9 = sbr.rel (0) target = $region5
    $region4: #{tpu_custom_call.1} parent=1 // pred_region
      %s11 = ssub.s32 64, 64
      %12 = vsyncadd [#allocation3], %s11
      %s14 = sshll.u32 [#allocation2], 4
      %s15 = int_to_ptr.vmem [resolvable:$true] %s14
      %17 = dma.hbm_to_vmem [thread:$0]  %s0, 64, %s15, [#allocation3]
    $region5: #{tpu_custom_call.1} parent=1 // pred_fallthru
      _
    // Predicated region
    $region6: #{tpu_custom_call.1} parent=1 // pred_check
      _
    $region7: #{tpu_custom_call.1} parent=1 // pred_check_branch
      %19 = sbr.rel (0) target = $region9
    $region8: #{tpu_custom_call.1} parent=1 // pred_region
      %20 = dma.done [#allocation3], 64
    $region9: #{tpu_custom_call.1} parent=1 // pred_fallthru
      _
    %v21 = vld [vmem:[#allocation2] sm:$0xf]
    %v22 = vmul.f32 %v21, 1.28
    %v23 = vlaneseq
    %vm24 = vcmp.ge.s32.totalorder %v23, 0
    %vm25 = vcmp.lt.s32.totalorder %v23, 512
    %vm26 = vmand %vm24, %vm25
    %27 = vst.msk [vmem:[#allocation5] sm:$0xf] %vm26, %v22
    // Predicated region
    $region10: #{tpu_custom_call.1} parent=1 // pred_check
      _
    $region11: #{tpu_custom_call.1} parent=1 // pred_check_branch
      %29 = sbr.rel (0) target = $region13
    $region12: #{tpu_custom_call.1} parent=1 // pred_region
      %s31 = ssub.s32 64, 64
      %32 = vsyncadd [#allocation4], %s31
      %s34 = sshll.u32 [#allocation5], 4
      %s35 = int_to_ptr.vmem [resolvable:$true] %s34
      %37 = dma.vmem_to_hbm [thread:$0]  %s35, 64, %s1, [#allocation4]
    $region13: #{tpu_custom_call.1} parent=1 // pred_fallthru
      _
    // Predicated region
    $region14: #{tpu_custom_call.1} parent=1 // pred_check
      _
    $region15: #{tpu_custom_call.1} parent=1 // pred_check_branch
      %39 = sbr.rel (0) target = $region17
    $region16: #{tpu_custom_call.1} parent=1 // pred_region
      %40 = dma.done [#allocation4], 64
    $region17: #{tpu_custom_call.1} parent=1 // pred_fallthru
      _
    %41 = vsyncpa [#allocation3], 1
    %42 = vsyncpa [#allocation4], 1

</llo_original>
